<compile_context>
chip_gen: v5e
topology: v5e:2x2
jax: 0.10.0
libtpu: 0.0.40
codegen_flags: <defaults>
</compile_context>

<pallas_src>
import functools

import jax
import jax.numpy as jnp
from jax.experimental import pallas as pl
from jax.experimental.pallas import tpu as pltpu

IN_DIM = 41
HIDDEN = 64
OUT_DIM = 41
HIDDEN_PAD = 128   # hidden width zero-padded to a full 128-lane vreg


def _round_up(n, m):
    return ((n + m - 1) // m) * m


def _mlp_kernel(x_ref, w1_ref, b1_ref, w2_ref, b2_ref, w3_ref, b3_ref, o_ref):
    # In-kernel bf16 cast of x (VPU, essentially free) — keeps the pallas_call
    # input stream at one f32 read of x, no wrapper-side cast pass.
    x = x_ref[...].astype(w1_ref.dtype)

    # Layer 1: (TB, 41) @ (41, 128) -> f32 accumulate; bias + ReLU in f32 (VPU).
    h1 = jnp.dot(x, w1_ref[...], preferred_element_type=jnp.float32)
    h1 = jnp.maximum(h1 + b1_ref[...], 0.0)

    # Layer 2: (TB, 128) @ (128, 128); matmul inputs bf16, elementwise f32.
    h2 = jnp.dot(h1.astype(w2_ref.dtype), w2_ref[...],
                 preferred_element_type=jnp.float32)
    h2 = jnp.maximum(h2 + b2_ref[...], 0.0)

    # Layer 3: (TB, 128) @ (128, 41) -> write the 41-wide f32 output directly.
    out = jnp.dot(h2.astype(w3_ref.dtype), w3_ref[...],
                  preferred_element_type=jnp.float32)
    o_ref[...] = (out + b3_ref[...]).astype(o_ref.dtype)


def init_params(key, in_dim=IN_DIM, hidden=HIDDEN, out_dim=OUT_DIM):
    """PyTorch nn.Linear-style init: U(-1/sqrt(fan_in), 1/sqrt(fan_in)).
    Weights stored as (in, out) so the kernel computes x @ W."""
    ks = jax.random.split(key, 6)

    def linear(kw, kb, fan_in, fan_out):
        bound = 1.0 / jnp.sqrt(jnp.float32(fan_in))
        w = jax.random.uniform(kw, (fan_in, fan_out), jnp.float32, -bound, bound)
        b = jax.random.uniform(kb, (1, fan_out), jnp.float32, -bound, bound)
        return w, b

    w1, b1 = linear(ks[0], ks[1], in_dim, hidden)
    w2, b2 = linear(ks[2], ks[3], hidden, hidden)
    w3, b3 = linear(ks[4], ks[5], hidden, out_dim)
    return {"w1": w1, "b1": b1, "w2": w2, "b2": b2, "w3": w3, "b3": b3}


def prepare_params(params, compute_dtype=jnp.bfloat16):
    """One-time param prep: zero-pad the *hidden* dim to 128 lanes and cast
    matmul operands to compute_dtype. Output dim stays 41. Biases stay f32."""
    def padto(a, rows, cols):
        return jnp.pad(a, ((0, rows - a.shape[0]), (0, cols - a.shape[1])))

    return {
        "w1": padto(params["w1"], IN_DIM, HIDDEN_PAD).astype(compute_dtype),
        "b1": padto(params["b1"], 1, HIDDEN_PAD).astype(jnp.float32),
        "w2": padto(params["w2"], HIDDEN_PAD, HIDDEN_PAD).astype(compute_dtype),
        "b2": padto(params["b2"], 1, HIDDEN_PAD).astype(jnp.float32),
        "w3": padto(params["w3"], HIDDEN_PAD, OUT_DIM).astype(compute_dtype),
        "b3": params["b3"].astype(jnp.float32),                # (1, 41)
    }


@functools.partial(jax.jit, static_argnames=("tile_b",))
def maxsat_model_forward(x, prepared, tile_b=1024):
    """x: (B, 41) float32. prepared: output of prepare_params(). Returns (B, 41) f32."""
    B = x.shape[0]
    w1, b1 = prepared["w1"], prepared["b1"]
    w2, b2 = prepared["w2"], prepared["b2"]
    w3, b3 = prepared["w3"], prepared["b3"]

    # Batch tile: multiple of 8 (f32 sublanes). Cap at ~B/2 so the grid has
    # >=2 steps when possible and both TensorCores get work under "parallel".
    half = _round_up((B + 1) // 2, 8)
    tb = min(tile_b, half)
    tb = max(8, (tb // 8) * 8)
    grid = (pl.cdiv(B, tb),)          # Pallas masks the partial last block.

    # Weights/biases: full-array blocks with a constant index_map -> pinned in
    # VMEM for the whole grid (no re-DMA per batch tile).
    resident = lambda a: pl.BlockSpec(a.shape, lambda i: (0, 0))

    flops = 2 * B * (IN_DIM * HIDDEN_PAD
                     + HIDDEN_PAD * HIDDEN_PAD
                     + HIDDEN_PAD * OUT_DIM)
    bytes_accessed = (B * IN_DIM * 4                 # x stream (f32 read)
                      + B * OUT_DIM * 4              # output stream (f32 write)
                      + sum(a.size * a.dtype.itemsize
                            for a in (w1, b1, w2, b2, w3, b3)))

    return pl.pallas_call(
        _mlp_kernel,
        out_shape=jax.ShapeDtypeStruct((B, OUT_DIM), jnp.float32),
        grid_spec=pltpu.PrefetchScalarGridSpec(
            num_scalar_prefetch=0,
            grid=grid,
            in_specs=[pl.BlockSpec((tb, IN_DIM), lambda i: (i, 0)),
                      resident(w1), resident(b1),
                      resident(w2), resident(b2),
                      resident(w3), resident(b3)],
            out_specs=pl.BlockSpec((tb, OUT_DIM), lambda i: (i, 0)),
        ),
        compiler_params=pltpu.CompilerParams(
            dimension_semantics=("parallel",)),
        cost_estimate=pl.CostEstimate(
            flops=flops, transcendentals=0, bytes_accessed=bytes_accessed),
    )(x, w1, b1, w2, b2, w3, b3)


def _reference_f32(x, p):
    h1 = jnp.maximum(x @ p["w1"] + p["b1"], 0.0)
    h2 = jnp.maximum(h1 @ p["w2"] + p["b2"], 0.0)
    return h2 @ p["w3"] + p["b3"]


def _reference_bf16_matched(x, prepared):
    """Same numerics as the kernel: bf16 matmul inputs, f32 accumulation."""
    xb = x.astype(prepared["w1"].dtype)
    h1 = jnp.maximum(
        jnp.dot(xb, prepared["w1"], preferred_element_type=jnp.float32)
        + prepared["b1"], 0.0)
    h2 = jnp.maximum(
        jnp.dot(h1.astype(prepared["w2"].dtype), prepared["w2"],
                preferred_element_type=jnp.float32) + prepared["b2"], 0.0)
    return (jnp.dot(h2.astype(prepared["w3"].dtype), prepared["w3"],
                    preferred_element_type=jnp.float32) + prepared["b3"])


if __name__ == "__main__":
    key = jax.random.PRNGKey(0)
    k_x, k_p = jax.random.split(key)

    params = init_params(k_p)
    prepared = prepare_params(params)

    # Small-batch case (as in the spec's toy usage).
    B = 8
    x = jax.random.normal(k_x, (B, IN_DIM), jnp.float32)
    out = jax.block_until_ready(maxsat_model_forward(x, prepared))
    assert out.shape == (B, OUT_DIM), out.shape
    assert jnp.allclose(out, _reference_bf16_matched(x, prepared),
                        atol=2e-3, rtol=2e-3), "mismatch vs bf16-matched ref"
    assert jnp.allclose(out, _reference_f32(x, params),
                        atol=5e-2, rtol=5e-2), "mismatch vs f32 reference"

    # Exercise the multi-step grid with a batch that doesn't divide the tile.
    B2 = 300
    x2 = jax.random.normal(jax.random.PRNGKey(1), (B2, IN_DIM), jnp.float32)
    out2 = jax.block_until_ready(maxsat_model_forward(x2, prepared, tile_b=128))
    assert out2.shape == (B2, OUT_DIM), out2.shape
    assert jnp.allclose(out2, _reference_f32(x2, params),
                        atol=5e-2, rtol=5e-2), "mismatch vs f32 reference (tiled)"

    print("KERNEL_OK")
</pallas_src>

<mosaic_0001>
module attributes {stable_mosaic.version = 11 : i64} {
  func.func @_mlp_kernel(%arg0: i32, %arg1: memref<8x41xf32, #tpu.memory_space<vmem>>, %arg2: memref<41x128xbf16, #tpu.memory_space<vmem>>, %arg3: memref<1x128xf32, #tpu.memory_space<vmem>>, %arg4: memref<128x128xbf16, #tpu.memory_space<vmem>>, %arg5: memref<1x128xf32, #tpu.memory_space<vmem>>, %arg6: memref<128x41xbf16, #tpu.memory_space<vmem>>, %arg7: memref<1x41xf32, #tpu.memory_space<vmem>>, %arg8: memref<8x41xf32, #tpu.memory_space<vmem>>) attributes {dimension_semantics = [#tpu.dimension_semantics<parallel>], iteration_bounds = array<i64: 1>, scalar_prefetch = 0 : i64, scratch_operands = 0 : i64, tpu.core_type = #tpu.core_type<tc>, window_params = [{transform_indices = @transform_0, window_bounds = array<i64: 8, 41>}, {pipeline_mode = #tpu.pipeline_mode<synchronous>, transform_indices = @transform_1, window_bounds = array<i64: 41, 128>}, {pipeline_mode = #tpu.pipeline_mode<synchronous>, transform_indices = @transform_2, window_bounds = array<i64: 1, 128>}, {pipeline_mode = #tpu.pipeline_mode<synchronous>, transform_indices = @transform_3, window_bounds = array<i64: 128, 128>}, {pipeline_mode = #tpu.pipeline_mode<synchronous>, transform_indices = @transform_4, window_bounds = array<i64: 1, 128>}, {pipeline_mode = #tpu.pipeline_mode<synchronous>, transform_indices = @transform_5, window_bounds = array<i64: 128, 41>}, {pipeline_mode = #tpu.pipeline_mode<synchronous>, transform_indices = @transform_6, window_bounds = array<i64: 1, 41>}, {transform_indices = @transform_7, window_bounds = array<i64: 8, 41>}]} {
    %c0 = arith.constant 0 : index
    %c0_0 = arith.constant 0 : index
    %0 = vector.load %arg1[%c0, %c0_0] : memref<8x41xf32, #tpu.memory_space<vmem>>, vector<8x41xf32>
    %1 = arith.truncf %0 : vector<8x41xf32> to vector<8x41xbf16>
    %c0_1 = arith.constant 0 : index
    %c0_2 = arith.constant 0 : index
    %2 = vector.load %arg2[%c0_1, %c0_2] : memref<41x128xbf16, #tpu.memory_space<vmem>>, vector<41x128xbf16>
    %cst = arith.constant dense<0.000000e+00> : vector<8x128xf32>
    %3 = tpu.matmul %1, %2, %cst {dimension_numbers = #tpu.dot_dimension_numbers<[1], [0], [0], [1], [0, 0, 1, 1], [], []>} : vector<8x41xbf16>, vector<41x128xbf16>, vector<8x128xf32> -> vector<8x128xf32>
    %c0_3 = arith.constant 0 : index
    %c0_4 = arith.constant 0 : index
    %4 = vector.load %arg3[%c0_3, %c0_4] : memref<1x128xf32, #tpu.memory_space<vmem>>, vector<1x128xf32>
    %5 = vector.broadcast %4 : vector<1x128xf32> to vector<8x128xf32>
    %6 = arith.addf %3, %5 : vector<8x128xf32>
    %cst_5 = arith.constant 0.000000e+00 : f32
    %7 = vector.broadcast %cst_5 : f32 to vector<8x128xf32>
    %8 = arith.maximumf %6, %7 : vector<8x128xf32>
    %9 = arith.truncf %8 : vector<8x128xf32> to vector<8x128xbf16>
    %c0_6 = arith.constant 0 : index
    %c0_7 = arith.constant 0 : index
    %10 = vector.load %arg4[%c0_6, %c0_7] : memref<128x128xbf16, #tpu.memory_space<vmem>>, vector<128x128xbf16>
    %cst_8 = arith.constant dense<0.000000e+00> : vector<8x128xf32>
    %11 = tpu.matmul %9, %10, %cst_8 {dimension_numbers = #tpu.dot_dimension_numbers<[1], [0], [0], [1], [0, 0, 1, 1], [], []>} : vector<8x128xbf16>, vector<128x128xbf16>, vector<8x128xf32> -> vector<8x128xf32>
    %c0_9 = arith.constant 0 : index
    %c0_10 = arith.constant 0 : index
    %12 = vector.load %arg5[%c0_9, %c0_10] : memref<1x128xf32, #tpu.memory_space<vmem>>, vector<1x128xf32>
    %13 = vector.broadcast %12 : vector<1x128xf32> to vector<8x128xf32>
    %14 = arith.addf %11, %13 : vector<8x128xf32>
    %cst_11 = arith.constant 0.000000e+00 : f32
    %15 = vector.broadcast %cst_11 : f32 to vector<8x128xf32>
    %16 = arith.maximumf %14, %15 : vector<8x128xf32>
    %17 = arith.truncf %16 : vector<8x128xf32> to vector<8x128xbf16>
    %c0_12 = arith.constant 0 : index
    %c0_13 = arith.constant 0 : index
    %18 = vector.load %arg6[%c0_12, %c0_13] : memref<128x41xbf16, #tpu.memory_space<vmem>>, vector<128x41xbf16>
    %cst_14 = arith.constant dense<0.000000e+00> : vector<8x41xf32>
    %19 = tpu.matmul %17, %18, %cst_14 {dimension_numbers = #tpu.dot_dimension_numbers<[1], [0], [0], [1], [0, 0, 1, 1], [], []>} : vector<8x128xbf16>, vector<128x41xbf16>, vector<8x41xf32> -> vector<8x41xf32>
    %c0_15 = arith.constant 0 : index
    %c0_16 = arith.constant 0 : index
    %20 = vector.load %arg7[%c0_15, %c0_16] : memref<1x41xf32, #tpu.memory_space<vmem>>, vector<1x41xf32>
    %21 = vector.broadcast %20 : vector<1x41xf32> to vector<8x41xf32>
    %22 = arith.addf %19, %21 : vector<8x41xf32>
    %c0_17 = arith.constant 0 : index
    %c0_18 = arith.constant 0 : index
    %23 = vector.load %arg8[%c0_17, %c0_18] : memref<8x41xf32, #tpu.memory_space<vmem>>, vector<8x41xf32>
    tpu.vector_store %arg8[%c0_17, %c0_18], %22 {strides = array<i32>} : memref<8x41xf32, #tpu.memory_space<vmem>>, vector<8x41xf32>,
    return
  }
  func.func @transform_0(%arg0: i32) -> (i32, i32) {
    %c0_i32 = arith.constant 0 : i32
    %c0_i32_0 = arith.constant 0 : i32
    return %arg0, %c0_i32 : i32, i32
  }
  func.func @transform_1(%arg0: i32) -> (i32, i32) {
    %c0_i32 = arith.constant 0 : i32
    %c0_i32_0 = arith.constant 0 : i32
    %c0_i32_1 = arith.constant 0 : i32
    return %c0_i32, %c0_i32_0 : i32, i32
  }
  func.func @transform_2(%arg0: i32) -> (i32, i32) {
    %c0_i32 = arith.constant 0 : i32
    %c0_i32_0 = arith.constant 0 : i32
    %c0_i32_1 = arith.constant 0 : i32
    return %c0_i32, %c0_i32_0 : i32, i32
  }
  func.func @transform_3(%arg0: i32) -> (i32, i32) {
    %c0_i32 = arith.constant 0 : i32
    %c0_i32_0 = arith.constant 0 : i32
    %c0_i32_1 = arith.constant 0 : i32
    return %c0_i32, %c0_i32_0 : i32, i32
  }
  func.func @transform_4(%arg0: i32) -> (i32, i32) {
    %c0_i32 = arith.constant 0 : i32
    %c0_i32_0 = arith.constant 0 : i32
    %c0_i32_1 = arith.constant 0 : i32
    return %c0_i32, %c0_i32_0 : i32, i32
  }
  func.func @transform_5(%arg0: i32) -> (i32, i32) {
    %c0_i32 = arith.constant 0 : i32
    %c0_i32_0 = arith.constant 0 : i32
    %c0_i32_1 = arith.constant 0 : i32
    return %c0_i32, %c0_i32_0 : i32, i32
  }
  func.func @transform_6(%arg0: i32) -> (i32, i32) {
    %c0_i32 = arith.constant 0 : i32
    %c0_i32_0 = arith.constant 0 : i32
    %c0_i32_1 = arith.constant 0 : i32
    return %c0_i32, %c0_i32_0 : i32, i32
  }
  func.func @transform_7(%arg0: i32) -> (i32, i32) {
    %c0_i32 = arith.constant 0 : i32
    %c0_i32_0 = arith.constant 0 : i32
    return %arg0, %c0_i32 : i32, i32
  }
}

</mosaic_0001>

<llo_original>
// kernel: maxsat_model_forward.1
$region0: #{maxsat_model_forward.1}
  #allocation0 [shape = 'u32[]', space=smem, size = 0x4, offset = 0x4, fixed_abs, tag = 'smem constant byte address 0x4 - core index']
  #allocation1 [shape = 'u32[72,128]{1,0:T(1,128)}', space=vmem, size = 0x9000, scoped, tag = 'internal scratch']
  %s0 = inlined_call_operand.hbm [shape: f32[8,41], index: 0, kind: input, shape index: {}]
  %s1 = inlined_call_operand.vmem [shape: bf16[41,128], index: 1, kind: input, shape index: {}]
  %s2 = inlined_call_operand.vmem [shape: f32[1,128], index: 2, kind: input, shape index: {}]
  %s3 = inlined_call_operand.vmem [shape: bf16[128,128], index: 3, kind: input, shape index: {}]
  %s4 = inlined_call_operand.vmem [shape: f32[1,128], index: 4, kind: input, shape index: {}]
  %s5 = inlined_call_operand.vmem [shape: bf16[128,41], index: 5, kind: input, shape index: {}]
  %s6 = inlined_call_operand.vmem [shape: f32[1,41], index: 6, kind: input, shape index: {}]
  %s7 = inlined_call_operand.hbm [shape: f32[8,41], index: 7, kind: output, shape index: {}]
  %s8 = sld [smem:[#allocation0]]
  $region42: #{maxsat_model_forward.1} parent=0
    _
  %s10 = ssub.s32 1, %s8
  %s11 = scalar_select 0, %s10, %s8
  $region1: #{maxsat_model_forward.1} parent=0
    #allocation2 [shape = 'u8[4096]{0}', space=vmem, size = 0x1000, scoped, tag = 'input window, operand 0, single buffered']
    #allocation3 [shape = 's32[1]{0}', space=sflag, size = 0x4, scoped, tag = 'scoped memory for maxsat_model_forward.1']
    #allocation4 [shape = 's32[1]{0}', space=sflag, size = 0x4, scoped, tag = 'scoped memory for maxsat_model_forward.1']
    #allocation5 [shape = 'u8[4096]{0}', space=vmem, size = 0x1000, scoped, tag = 'output window, operand 0, single buffered']
    %12 = vsyncpa [#allocation3], 0
    %13 = vsyncpa [#allocation4], 0
    // Predicated region
    $region2: #{maxsat_model_forward.1} parent=1 // pred_check
      _
    $region3: #{maxsat_model_forward.1} parent=1 // pred_check_branch
      %15 = sbr.rel (0) target = $region5
    $region4: #{maxsat_model_forward.1} parent=1 // pred_region
      %17 = vsyncadd [#allocation3], 0
      %s19 = sshll.u32 %s0, 4
      %s20 = int_to_ptr.hbm [resolvable:$true] %s19
      %s21 = sshll.u32 [#allocation2], 4
      %s22 = int_to_ptr.vmem [resolvable:$true] %s21
      %24 = dma.hbm_to_vmem [thread:$0]  %s20, 128, %s22, [#allocation3]
    $region5: #{maxsat_model_forward.1} parent=1 // pred_fallthru
      _
    // Predicated region
    $region6: #{maxsat_model_forward.1} parent=1 // pred_check
      _
    $region7: #{maxsat_model_forward.1} parent=1 // pred_check_branch
      %26 = sbr.rel (0) target = $region9
    $region8: #{maxsat_model_forward.1} parent=1 // pred_region
      _
    $region9: #{maxsat_model_forward.1} parent=1 // pred_fallthru
      _
    // Predicated region
    $region10: #{maxsat_model_forward.1} parent=1 // pred_check
      _
    $region11: #{maxsat_model_forward.1} parent=1 // pred_check_branch
      %28 = sbr.rel (0) target = $region13
    $region12: #{maxsat_model_forward.1} parent=1 // pred_region
      _
    $region13: #{maxsat_model_forward.1} parent=1 // pred_fallthru
      _
    // Predicated region
    $region14: #{maxsat_model_forward.1} parent=1 // pred_check
      _
    $region15: #{maxsat_model_forward.1} parent=1 // pred_check_branch
      %30 = sbr.rel (0) target = $region17
    $region16: #{maxsat_model_forward.1} parent=1 // pred_region
      _
    $region17: #{maxsat_model_forward.1} parent=1 // pred_fallthru
      _
    // Predicated region
    $region18: #{maxsat_model_forward.1} parent=1 // pred_check
      _
    $region19: #{maxsat_model_forward.1} parent=1 // pred_check_branch
      %32 = sbr.rel (0) target = $region21
    $region20: #{maxsat_model_forward.1} parent=1 // pred_region
      _
    $region21: #{maxsat_model_forward.1} parent=1 // pred_fallthru
      _
    // Predicated region
    $region22: #{maxsat_model_forward.1} parent=1 // pred_check
      _
    $region23: #{maxsat_model_forward.1} parent=1 // pred_check_branch
      %34 = sbr.rel (0) target = $region25
    $region24: #{maxsat_model_forward.1} parent=1 // pred_region
      _
    $region25: #{maxsat_model_forward.1} parent=1 // pred_fallthru
      _
    // Predicated region
    $region26: #{maxsat_model_forward.1} parent=1 // pred_check
      _
    $region27: #{maxsat_model_forward.1} parent=1 // pred_check_branch
      %36 = sbr.rel (0) target = $region29
    $region28: #{maxsat_model_forward.1} parent=1 // pred_region
      _
    $region29: #{maxsat_model_forward.1} parent=1 // pred_fallthru
      _
    // Predicated region
    $region30: #{maxsat_model_forward.1} parent=1 // pred_check
      _
    $region31: #{maxsat_model_forward.1} parent=1 // pred_check_branch
      %38 = sbr.rel (0) target = $region33
    $region32: #{maxsat_model_forward.1} parent=1 // pred_region
      %40 = dma.done [#allocation3], 128
    $region33: #{maxsat_model_forward.1} parent=1 // pred_fallthru
      _
    %v42 = vld [vmem:[#allocation2] sm:$0xff]
    %v43 = vpack.c.bf16 %v42, %v42
    %v44 = vld [vmem:[%s1] sm:$0xf]
    %v45 = vld [vmem:[%s1 + $0x4] sm:$0xf]
    %v46 = vld [vmem:[%s1 + $0x8] sm:$0xf]
    %v47 = vld [vmem:[%s1 + $0xc] sm:$0xf]
    %v48 = vld [vmem:[%s1 + $0x10] sm:$0xf]
    %v49 = vld [vmem:[%s1 + $0x14] sm:$0x1]
    %v50 = vld [vmem:[%s2] sm:$0x1]
    %v52 = vperm.slane %v50, 0
    %v60 = vunpack.c.l.b16 %v44
    %v61 = vunpack.c.l.b16 %v45
    %v62 = vunpack.c.l.b16 %v46
    %v63 = vunpack.c.l.b16 %v47
    %v64 = vunpack.c.l.b16 %v48
    %v65 = vunpack.c.l.b16 %v49
    %v66 = vpack.c.b16 %v61, %v60
    %v67 = vpack.c.b16 %v63, %v62
    %v68 = vpack.c.b16 %v65, %v64
    %vm71 = vcmask 334848
    %v73 = vsel %vm71, %v43, 0
    %vm75 = vcmask 1043456
    %vm76 = vcmask 1044480
    %v77 = vsel %vm75, 4294967295, 65535
    %v78 = vsel %vm76, %v77, 0
    %v80 = vand.u32 %v68, %v78
    %82 = vmatpush.bf16.msra.mxu0 0
    %83 = vmatpush.bf16.msra.mxu0 0
    %84 = vmatpush.bf16.msra.mxu0 0
    %85 = vmatpush.bf16.msra.mxu0 0
    %86 = vmatpush.bf16.msra.mxu0 0
    %87 = vmatpush.bf16.msra.mxu0 %v80
    %88 = vmatpush.bf16.msra.mxu0 %v67
    %89 = vmatpush.bf16.msra.mxu0 %v66
    %90 = vmatmul.bf16.gmra.mxu0 %v73
    %v91 = vpop.f32.mrf.mxu0
    %v92 = vadd.f32 %v52, %v91
    %v93 = vpop.f32.mrf.mxu0
    %94 = vdwg.mxu0
    %v95 = vmax.f32 %v92, 0.0
    %v96 = vpack.c.bf16 %v95, %v95
    %v97 = vld [vmem:[%s3] sm:$0xf]
    %v98 = vld [vmem:[%s3 + $0x4] sm:$0xf]
    %v99 = vld [vmem:[%s3 + $0x8] sm:$0xf]
    %v100 = vld [vmem:[%s3 + $0xc] sm:$0xf]
    %v101 = vld [vmem:[%s3 + $0x10] sm:$0xf]
    %v102 = vld [vmem:[%s3 + $0x14] sm:$0xf]
    %v103 = vld [vmem:[%s3 + $0x18] sm:$0xf]
    %v104 = vld [vmem:[%s3 + $0x1c] sm:$0xf]
    %v105 = vld [vmem:[%s3 + $0x20] sm:$0xf]
    %v106 = vld [vmem:[%s3 + $0x24] sm:$0xf]
    %v107 = vld [vmem:[%s3 + $0x28] sm:$0xf]
    %v108 = vld [vmem:[%s3 + $0x2c] sm:$0xf]
    %v109 = vld [vmem:[%s3 + $0x30] sm:$0xf]
    %v110 = vld [vmem:[%s3 + $0x34] sm:$0xf]
    %v111 = vld [vmem:[%s3 + $0x38] sm:$0xf]
    %v112 = vld [vmem:[%s3 + $0x3c] sm:$0xf]
    %v113 = vld [vmem:[%s4] sm:$0x1]
    %v115 = vperm.slane %v113, 0
    %v133 = vunpack.c.l.b16 %v97
    %v134 = vunpack.c.l.b16 %v98
    %v135 = vunpack.c.l.b16 %v99
    %v136 = vunpack.c.l.b16 %v100
    %v137 = vunpack.c.l.b16 %v101
    %v138 = vunpack.c.l.b16 %v102
    %v139 = vunpack.c.l.b16 %v103
    %v140 = vunpack.c.l.b16 %v104
    %v141 = vunpack.c.l.b16 %v105
    %v142 = vunpack.c.l.b16 %v106
    %v143 = vunpack.c.l.b16 %v107
    %v144 = vunpack.c.l.b16 %v108
    %v145 = vunpack.c.l.b16 %v109
    %v146 = vunpack.c.l.b16 %v110
    %v147 = vunpack.c.l.b16 %v111
    %v148 = vunpack.c.l.b16 %v112
    %v149 = vpack.c.b16 %v134, %v133
    %v150 = vpack.c.b16 %v136, %v135
    %v151 = vpack.c.b16 %v138, %v137
    %v152 = vpack.c.b16 %v140, %v139
    %v153 = vpack.c.b16 %v142, %v141
    %v154 = vpack.c.b16 %v144, %v143
    %v155 = vpack.c.b16 %v146, %v145
    %v156 = vpack.c.b16 %v148, %v147
    %165 = vmatpush.bf16.msra.mxu0 %v156
    %166 = vmatpush.bf16.msra.mxu0 %v155
    %167 = vmatpush.bf16.msra.mxu0 %v154
    %168 = vmatpush.bf16.msra.mxu0 %v153
    %169 = vmatpush.bf16.msra.mxu0 %v152
    %170 = vmatpush.bf16.msra.mxu0 %v151
    %171 = vmatpush.bf16.msra.mxu0 %v150
    %172 = vmatpush.bf16.msra.mxu0 %v149
    %173 = vmatmul.bf16.gmra.mxu0 %v96
    %v174 = vpop.f32.mrf.mxu0
    %v175 = vadd.f32 %v115, %v174
    %v176 = vpop.f32.mrf.mxu0
    %177 = vdwg.mxu0
    %v178 = vmax.f32 %v175, 0.0
    %v179 = vpack.c.bf16 %v178, %v178
    %v180 = vld [vmem:[%s5] sm:$0xf]
    %v181 = vld [vmem:[%s5 + $0x4] sm:$0xf]
    %v182 = vld [vmem:[%s5 + $0x8] sm:$0xf]
    %v183 = vld [vmem:[%s5 + $0xc] sm:$0xf]
    %v184 = vld [vmem:[%s5 + $0x10] sm:$0xf]
    %v185 = vld [vmem:[%s5 + $0x14] sm:$0xf]
    %v186 = vld [vmem:[%s5 + $0x18] sm:$0xf]
    %v187 = vld [vmem:[%s5 + $0x1c] sm:$0xf]
    %v188 = vld [vmem:[%s5 + $0x20] sm:$0xf]
    %v189 = vld [vmem:[%s5 + $0x24] sm:$0xf]
    %v190 = vld [vmem:[%s5 + $0x28] sm:$0xf]
    %v191 = vld [vmem:[%s5 + $0x2c] sm:$0xf]
    %v192 = vld [vmem:[%s5 + $0x30] sm:$0xf]
    %v193 = vld [vmem:[%s5 + $0x34] sm:$0xf]
    %v194 = vld [vmem:[%s5 + $0x38] sm:$0xf]
    %v195 = vld [vmem:[%s5 + $0x3c] sm:$0xf]
    %v196 = vld [vmem:[%s6] sm:$0x1]
    %v198 = vperm.slane %v196, 0
    %v216 = vunpack.c.l.b16 %v180
    %v217 = vunpack.c.l.b16 %v181
    %v218 = vunpack.c.l.b16 %v182
    %v219 = vunpack.c.l.b16 %v183
    %v220 = vunpack.c.l.b16 %v184
    %v221 = vunpack.c.l.b16 %v185
    %v222 = vunpack.c.l.b16 %v186
    %v223 = vunpack.c.l.b16 %v187
    %v224 = vunpack.c.l.b16 %v188
    %v225 = vunpack.c.l.b16 %v189
    %v226 = vunpack.c.l.b16 %v190
    %v227 = vunpack.c.l.b16 %v191
    %v228 = vunpack.c.l.b16 %v192
    %v229 = vunpack.c.l.b16 %v193
    %v230 = vunpack.c.l.b16 %v194
    %v231 = vunpack.c.l.b16 %v195
    %v232 = vpack.c.b16 %v217, %v216
    %v233 = vpack.c.b16 %v219, %v218
    %v234 = vpack.c.b16 %v221, %v220
    %v235 = vpack.c.b16 %v223, %v222
    %v236 = vpack.c.b16 %v225, %v224
    %v237 = vpack.c.b16 %v227, %v226
    %v238 = vpack.c.b16 %v229, %v228
    %v239 = vpack.c.b16 %v231, %v230
    %248 = vmatpush.bf16.msra.mxu0 %v239
    %249 = vmatpush.bf16.msra.mxu0 %v238
    %250 = vmatpush.bf16.msra.mxu0 %v237
    %251 = vmatpush.bf16.msra.mxu0 %v236
    %252 = vmatpush.bf16.msra.mxu0 %v235
    %253 = vmatpush.bf16.msra.mxu0 %v234
    %254 = vmatpush.bf16.msra.mxu0 %v233
    %255 = vmatpush.bf16.msra.mxu0 %v232
    %256 = vmatmul.bf16.gmra.mxu0 %v179
    %v257 = vpop.f32.mrf.mxu0
    %v258 = vadd.f32 %v198, %v257
    %v259 = vpop.f32.mrf.mxu0
    %260 = vdwg.mxu0
    %261 = vst.msk [vmem:[#allocation5] sm:$0xff] %vm71, %v258
    // Predicated region
    $region34: #{maxsat_model_forward.1} parent=1 // pred_check
      _
    $region35: #{maxsat_model_forward.1} parent=1 // pred_check_branch
      %263 = sbr.rel (0) target = $region37
    $region36: #{maxsat_model_forward.1} parent=1 // pred_region
      %265 = vsyncadd [#allocation4], 0
      %s267 = sshll.u32 [#allocation5], 4
      %s268 = int_to_ptr.vmem [resolvable:$true] %s267
      %s269 = sshll.u32 %s7, 4
      %s270 = int_to_ptr.hbm [resolvable:$true] %s269
      %272 = dma.vmem_to_hbm [thread:$0]  %s268, 128, %s270, [#allocation4]
    $region37: #{maxsat_model_forward.1} parent=1 // pred_fallthru
      _
    // Predicated region
    $region38: #{maxsat_model_forward.1} parent=1 // pred_check
      _
    $region39: #{maxsat_model_forward.1} parent=1 // pred_check_branch
      %274 = sbr.rel (0) target = $region41
    $region40: #{maxsat_model_forward.1} parent=1 // pred_region
      %276 = dma.done [#allocation4], 128
    $region41: #{maxsat_model_forward.1} parent=1 // pred_fallthru
      _
    %277 = vsyncpa [#allocation3], 1
    %278 = vsyncpa [#allocation4], 1

</llo_original>
